<compile_context>
chip_gen: v7x
topology: tpu7x:2x2x1
jax: 0.10.0
libtpu: 0.0.40
codegen_flags: <defaults>
</compile_context>

<pallas_src>
import jax
import jax.numpy as jnp
from jax import lax
from jax.experimental import pallas as pl
from jax.experimental.pallas import tpu as pltpu


def _encoder_movie_kernel(mid_ids_ref,   # [TB, 1]      int32
                          gen_ids_ref,   # [G*TB, 1]    int32 (genre-major within tile)
                          mid_tab_ref,   # [Vm+1, E]    bf16  (mid_table @ Wm.T, last row = bias)
                          gen_tab_ref,   # [Vg+1, E]    bf16  (gen_table @ Wg.T, last row = bias)
                          out_ref):      # [TB, 2E]     f32
    TB = mid_ids_ref.shape[0]
    GTB = gen_ids_ref.shape[0]
    G = GTB // TB
    Vm1, E = mid_tab_ref.shape
    Vg1 = gen_tab_ref.shape[0]
    f32 = jnp.float32
    one, zero = f32(1.0), f32(0.0)

    # One-hot row select with an extra always-on "bias" column (column Vm / Vg).
    mid_cols = lax.broadcasted_iota(jnp.int32, (TB, Vm1), 1)
    mid_oh = jnp.where((mid_cols == mid_ids_ref[...]) | (mid_cols == Vm1 - 1),
                       one, zero).astype(jnp.bfloat16)                      # [TB, Vm+1]
    gen_cols = lax.broadcasted_iota(jnp.int32, (GTB, Vg1), 1)
    gen_oh = jnp.where((gen_cols == gen_ids_ref[...]) | (gen_cols == Vg1 - 1),
                       one, zero).astype(jnp.bfloat16)                      # [G*TB, Vg+1]

    # Fused gather + Linear + bias (tables pre-folded in the wrapper) + ReLU.
    mid = jnp.maximum(
        jnp.dot(mid_oh, mid_tab_ref[...], preferred_element_type=f32), 0.0)  # [TB, E]
    gen = jnp.maximum(
        jnp.dot(gen_oh, gen_tab_ref[...], preferred_element_type=f32), 0.0)  # [G*TB, E]

    # Mean over genres: rows are genre-major within the tile (row g*TB + t), so the
    # reshape is a free leading-axis split and the sum is G aligned [TB, E] VPU adds.
    gmean = jnp.sum(gen.reshape(G, TB, E), axis=0) * f32(1.0 / G)             # [TB, E]

    # "Concat" via two direct stores into the output tile (no temporary).
    out_ref[:, :E] = mid
    out_ref[:, E:] = gmean


def encoder_movie_id_forward(x_mid_ids, x_genre_ids, params, *, tb=8):
    """x_mid_ids: [B, 1] int, x_genre_ids: [B, G] int -> [B, 1, 2E] f32.

    tb: batch tile (multiple of 8). At production batch sizes raise it against the
    per-generation VMEM budget (roughly half on v7x's 64 MiB vs v5e/v6e's 128 MiB).
    """
    mid_table = params["mid_embedding"]                   # [Vm, E] f32
    gen_table = params["genre_embedding"]                 # [Vg, E] f32
    wm, bm = params["mid_fc_w"], params["mid_fc_b"]       # [E, E], [E] (torch [out,in])
    wg, bg = params["genre_fc_w"], params["genre_fc_b"]   # [E, E], [E]

    B = x_mid_ids.shape[0]
    G = x_genre_ids.shape[1]
    E = mid_table.shape[1]

    # Fold Embedding + Linear (both linear maps compose exactly) in f32, append the
    # bias as an extra table row, then cast the MXU operand to bf16.
    mid_folded = jnp.concatenate([mid_table @ wm.T, bm[None, :]], axis=0
                                 ).astype(jnp.bfloat16)   # [Vm+1, E]
    gen_folded = jnp.concatenate([gen_table @ wg.T, bg[None, :]], axis=0
                                 ).astype(jnp.bfloat16)   # [Vg+1, E]

    # Pad the batch to a multiple of tb (padding rows use id 0; sliced away below).
    num_tiles = pl.cdiv(B, tb)
    b_pad = num_tiles * tb
    mid_ids = jnp.zeros((b_pad, 1), jnp.int32).at[:B, 0].set(
        x_mid_ids.reshape(B).astype(jnp.int32))
    gen_pad = jnp.zeros((b_pad, G), jnp.int32).at[:B].set(x_genre_ids.astype(jnp.int32))
    # Tile-major, genre-major-within-tile layout so each grid step sees a contiguous
    # [G*tb, 1] block whose in-kernel reshape/mean is sublane aligned.
    gen_ids = gen_pad.reshape(num_tiles, tb, G).transpose(0, 2, 1).reshape(
        num_tiles * G * tb, 1)

    grid_spec = pltpu.PrefetchScalarGridSpec(
        num_scalar_prefetch=0,
        grid=(num_tiles,),
        in_specs=[
            pl.BlockSpec((tb, 1), lambda i: (i, 0)),            # mid ids (pipelined)
            pl.BlockSpec((G * tb, 1), lambda i: (i, 0)),        # genre ids (pipelined)
            pl.BlockSpec(mid_folded.shape, lambda i: (0, 0)),   # VMEM-resident table
            pl.BlockSpec(gen_folded.shape, lambda i: (0, 0)),   # VMEM-resident table
        ],
        out_specs=pl.BlockSpec((tb, 2 * E), lambda i: (i, 0)),
    )

    out2d = pl.pallas_call(
        _encoder_movie_kernel,
        out_shape=jax.ShapeDtypeStruct((b_pad, 2 * E), jnp.float32),
        grid_spec=grid_spec,
        compiler_params=pltpu.CompilerParams(
            dimension_semantics=("parallel",),     # v7x: shard batch tiles over 2 TCs
            vmem_limit_bytes=32 * 1024 * 1024,     # explicit (v5e default is 16 MiB);
                                                   # raise for large tb / vocab on v5e/v6e
        ),
    )(mid_ids, gen_ids, mid_folded, gen_folded)

    return out2d[:B].reshape(B, 1, 2 * E)


def _reference_forward(x_mid_ids, x_genre_ids, params):
    """Pure-JAX f32 reference matching the PyTorch module."""
    mid_e = params["mid_embedding"][x_mid_ids]          # [B, 1, E]
    gen_e = params["genre_embedding"][x_genre_ids]      # [B, G, E]
    x_mid = jax.nn.relu(mid_e @ params["mid_fc_w"].T + params["mid_fc_b"])
    x_gen = jax.nn.relu(gen_e @ params["genre_fc_w"].T + params["genre_fc_b"])
    x_gen = jnp.mean(x_gen, axis=1, keepdims=True)      # [B, 1, E]
    return jnp.concatenate([x_mid, x_gen], axis=-1)     # [B, 1, 2E]


def _init_params(key, movie_id_max, movie_categories_max, embed_com):
    ks = jax.random.split(key, 6)
    s = 1.0 / jnp.sqrt(jnp.float32(embed_com))
    return {
        "mid_embedding": jax.random.normal(ks[0], (movie_id_max, embed_com), jnp.float32),
        "genre_embedding": jax.random.normal(ks[1], (movie_categories_max, embed_com),
                                             jnp.float32),
        "mid_fc_w": jax.random.uniform(ks[2], (embed_com, embed_com), jnp.float32, -s, s),
        "mid_fc_b": jax.random.uniform(ks[3], (embed_com,), jnp.float32, -s, s),
        "genre_fc_w": jax.random.uniform(ks[4], (embed_com, embed_com), jnp.float32, -s, s),
        "genre_fc_b": jax.random.uniform(ks[5], (embed_com,), jnp.float32, -s, s),
    }
    # TODO(synk): combine_moive_fc / tanh / dropout exist in __init__ but are never
    # used by forward(), so they are intentionally omitted.


if __name__ == "__main__":
    MOVIE_ID_MAX, MOVIE_CAT_MAX, E = 100, 19, 32
    key = jax.random.PRNGKey(0)
    k_par, k1, k2, k3, k4 = jax.random.split(key, 5)
    params = _init_params(k_par, MOVIE_ID_MAX, MOVIE_CAT_MAX, E)

    # bf16 folded tables vs the f32 reference -> tolerance at the bf16 rounding level.
    RTOL = ATOL = 2e-2

    # Case 1: tiny batch (pads up to one TB=8 tile).
    B, G = 2, 8
    x_mid_ids = jax.random.randint(k1, (B, 1), 0, MOVIE_ID_MAX, jnp.int32)
    x_genre_ids = jax.random.randint(k2, (B, G), 0, MOVIE_CAT_MAX, jnp.int32)
    out = jax.block_until_ready(encoder_movie_id_forward(x_mid_ids, x_genre_ids, params))
    ref = _reference_forward(x_mid_ids, x_genre_ids, params)
    assert out.shape == (B, 1, 2 * E) and out.dtype == jnp.float32
    assert jnp.allclose(out, ref, rtol=RTOL, atol=ATOL), "mismatch vs reference (case 1)"

    # Case 2: multi-tile grid (B=10 -> 2 tiles of TB=8) with non-power-of-two G.
    B2, G2 = 10, 6
    x_mid2 = jax.random.randint(k3, (B2, 1), 0, MOVIE_ID_MAX, jnp.int32)
    x_gen2 = jax.random.randint(k4, (B2, G2), 0, MOVIE_CAT_MAX, jnp.int32)
    out2 = jax.block_until_ready(encoder_movie_id_forward(x_mid2, x_gen2, params))
    ref2 = _reference_forward(x_mid2, x_gen2, params)
    assert out2.shape == (B2, 1, 2 * E) and out2.dtype == jnp.float32
    assert jnp.allclose(out2, ref2, rtol=RTOL, atol=ATOL), "mismatch vs reference (case 2)"

    print("KERNEL_OK")
</pallas_src>

<mosaic_0001>
module attributes {stable_mosaic.version = 11 : i64} {
  func.func @_encoder_movie_kernel(%arg0: i32, %arg1: memref<8x1xi32, #tpu.memory_space<vmem>>, %arg2: memref<64x1xi32, #tpu.memory_space<vmem>>, %arg3: memref<101x32xbf16, #tpu.memory_space<vmem>>, %arg4: memref<20x32xbf16, #tpu.memory_space<vmem>>, %arg5: memref<8x64xf32, #tpu.memory_space<vmem>>) attributes {dimension_semantics = [#tpu.dimension_semantics<parallel>], iteration_bounds = array<i64: 1>, scalar_prefetch = 0 : i64, scratch_operands = 0 : i64, tpu.core_type = #tpu.core_type<tc>, window_params = [{transform_indices = @transform_0, window_bounds = array<i64: 8, 1>}, {transform_indices = @transform_1, window_bounds = array<i64: 64, 1>}, {pipeline_mode = #tpu.pipeline_mode<synchronous>, transform_indices = @transform_2, window_bounds = array<i64: 101, 32>}, {pipeline_mode = #tpu.pipeline_mode<synchronous>, transform_indices = @transform_3, window_bounds = array<i64: 20, 32>}, {transform_indices = @transform_4, window_bounds = array<i64: 8, 64>}]} {
    %0 = tpu.iota {dimensions = array<i32: 1>} : vector<8x101xi32>
    %c0 = arith.constant 0 : index
    %c0_0 = arith.constant 0 : index
    %1 = vector.load %arg1[%c0, %c0_0] : memref<8x1xi32, #tpu.memory_space<vmem>>, vector<8x1xi32>
    %2 = vector.broadcast %1 : vector<8x1xi32> to vector<8x101xi32>
    %3 = arith.cmpi eq, %0, %2 : vector<8x101xi32>
    %c100_i32 = arith.constant 100 : i32
    %4 = vector.broadcast %c100_i32 : i32 to vector<8x101xi32>
    %5 = arith.cmpi eq, %0, %4 : vector<8x101xi32>
    %6 = arith.ori %3, %5 : vector<8x101xi1>
    %cst = arith.constant 1.000000e+00 : f32
    %cst_1 = arith.constant 0.000000e+00 : f32
    %7 = vector.broadcast %cst : f32 to vector<8x101xf32>
    %8 = vector.broadcast %cst_1 : f32 to vector<8x101xf32>
    %9 = arith.select %6, %7, %8 : vector<8x101xi1>, vector<8x101xf32>
    %10 = arith.truncf %9 : vector<8x101xf32> to vector<8x101xbf16>
    %11 = tpu.iota {dimensions = array<i32: 1>} : vector<64x20xi32>
    %c0_2 = arith.constant 0 : index
    %c0_3 = arith.constant 0 : index
    %12 = vector.load %arg2[%c0_2, %c0_3] : memref<64x1xi32, #tpu.memory_space<vmem>>, vector<64x1xi32>
    %13 = vector.broadcast %12 : vector<64x1xi32> to vector<64x20xi32>
    %14 = arith.cmpi eq, %11, %13 : vector<64x20xi32>
    %c19_i32 = arith.constant 19 : i32
    %15 = vector.broadcast %c19_i32 : i32 to vector<64x20xi32>
    %16 = arith.cmpi eq, %11, %15 : vector<64x20xi32>
    %17 = arith.ori %14, %16 : vector<64x20xi1>
    %cst_4 = arith.constant 1.000000e+00 : f32
    %cst_5 = arith.constant 0.000000e+00 : f32
    %18 = vector.broadcast %cst_4 : f32 to vector<64x20xf32>
    %19 = vector.broadcast %cst_5 : f32 to vector<64x20xf32>
    %20 = arith.select %17, %18, %19 : vector<64x20xi1>, vector<64x20xf32>
    %21 = arith.truncf %20 : vector<64x20xf32> to vector<64x20xbf16>
    %c0_6 = arith.constant 0 : index
    %c0_7 = arith.constant 0 : index
    %22 = vector.load %arg3[%c0_6, %c0_7] : memref<101x32xbf16, #tpu.memory_space<vmem>>, vector<101x32xbf16>
    %cst_8 = arith.constant dense<0.000000e+00> : vector<8x32xf32>
    %23 = tpu.matmul %10, %22, %cst_8 {dimension_numbers = #tpu.dot_dimension_numbers<[1], [0], [0], [1], [0, 0, 1, 1], [], []>} : vector<8x101xbf16>, vector<101x32xbf16>, vector<8x32xf32> -> vector<8x32xf32>
    %cst_9 = arith.constant 0.000000e+00 : f32
    %24 = vector.broadcast %cst_9 : f32 to vector<8x32xf32>
    %25 = arith.maximumf %23, %24 : vector<8x32xf32>
    %c0_10 = arith.constant 0 : index
    %c0_11 = arith.constant 0 : index
    %26 = vector.load %arg4[%c0_10, %c0_11] : memref<20x32xbf16, #tpu.memory_space<vmem>>, vector<20x32xbf16>
    %cst_12 = arith.constant dense<0.000000e+00> : vector<64x32xf32>
    %27 = tpu.matmul %21, %26, %cst_12 {dimension_numbers = #tpu.dot_dimension_numbers<[1], [0], [0], [1], [0, 0, 1, 1], [], []>} : vector<64x20xbf16>, vector<20x32xbf16>, vector<64x32xf32> -> vector<64x32xf32>
    %cst_13 = arith.constant 0.000000e+00 : f32
    %28 = vector.broadcast %cst_13 : f32 to vector<64x32xf32>
    %29 = arith.maximumf %27, %28 : vector<64x32xf32>
    %30 = vector.shape_cast %29 : vector<64x32xf32> to vector<8x8x32xf32>
    %cst_14 = arith.constant dense<0.000000e+00> : vector<8x32xf32>
    %31 = vector.multi_reduction <add>, %30, %cst_14 [0] : vector<8x8x32xf32> to vector<8x32xf32>
    %cst_15 = arith.constant 1.250000e-01 : f32
    %32 = vector.broadcast %cst_15 : f32 to vector<8x32xf32>
    %33 = arith.mulf %31, %32 : vector<8x32xf32>
    %c0_16 = arith.constant 0 : index
    %c0_17 = arith.constant 0 : index
    %34 = vector.load %arg5[%c0_16, %c0_17] : memref<8x64xf32, #tpu.memory_space<vmem>>, vector<8x32xf32>
    tpu.vector_store %arg5[%c0_16, %c0_17], %25 {strides = array<i32>} : memref<8x64xf32, #tpu.memory_space<vmem>>, vector<8x32xf32>,
    %c0_18 = arith.constant 0 : index
    %c32 = arith.constant 32 : index
    %35 = vector.load %arg5[%c0_18, %c32] : memref<8x64xf32, #tpu.memory_space<vmem>>, vector<8x32xf32>
    tpu.vector_store %arg5[%c0_18, %c32], %33 {strides = array<i32>} : memref<8x64xf32, #tpu.memory_space<vmem>>, vector<8x32xf32>,
    return
  }
  func.func @transform_0(%arg0: i32) -> (i32, i32) {
    %c0_i32 = arith.constant 0 : i32
    %c0_i32_0 = arith.constant 0 : i32
    return %arg0, %c0_i32 : i32, i32
  }
  func.func @transform_1(%arg0: i32) -> (i32, i32) {
    %c0_i32 = arith.constant 0 : i32
    %c0_i32_0 = arith.constant 0 : i32
    return %arg0, %c0_i32 : i32, i32
  }
  func.func @transform_2(%arg0: i32) -> (i32, i32) {
    %c0_i32 = arith.constant 0 : i32
    %c0_i32_0 = arith.constant 0 : i32
    %c0_i32_1 = arith.constant 0 : i32
    return %c0_i32, %c0_i32_0 : i32, i32
  }
  func.func @transform_3(%arg0: i32) -> (i32, i32) {
    %c0_i32 = arith.constant 0 : i32
    %c0_i32_0 = arith.constant 0 : i32
    %c0_i32_1 = arith.constant 0 : i32
    return %c0_i32, %c0_i32_0 : i32, i32
  }
  func.func @transform_4(%arg0: i32) -> (i32, i32) {
    %c0_i32 = arith.constant 0 : i32
    %c0_i32_0 = arith.constant 0 : i32
    return %arg0, %c0_i32 : i32, i32
  }
}

</mosaic_0001>

<llo_original>
// kernel: tpu_custom_call.1
$region0: #{tpu_custom_call.1}
  #allocation0 [shape = 'u32[]', space=smem, size = 0x4, offset = 0x4, fixed_abs, tag = 'smem constant byte address 0x4 - core index']
  #allocation1 [shape = 'u32[144,128]{1,0:T(1,128)}', space=vmem, size = 0x12000, scoped, tag = 'internal scratch']
  %s0 = inlined_call_operand.vmem [shape: s32[8,1], index: 0, kind: input, shape index: {}]
  %s1 = inlined_call_operand.vmem [shape: s32[64,1], index: 1, kind: input, shape index: {}]
  %s2 = inlined_call_operand.vmem [shape: bf16[101,32], index: 2, kind: input, shape index: {}]
  %s3 = inlined_call_operand.vmem [shape: bf16[20,32], index: 3, kind: input, shape index: {}]
  %s4 = inlined_call_operand.hbm [shape: f32[8,64], index: 4, kind: output, shape index: {}]
  %s5 = sld [smem:[#allocation0]]
  $region26: #{tpu_custom_call.1} parent=0
    _
  %s7 = ssub.s32 1, %s5
  %s8 = scalar_select 0, %s7, %s5
  $region1: #{tpu_custom_call.1} parent=0
    #allocation2 [shape = 'u8[4096]{0}', space=vmem, size = 0x1000, scoped, tag = 'output window, operand 0, single buffered']
    #allocation3 [shape = 's32[1]{0}', space=sflag, size = 0x4, scoped, tag = 'scoped memory for tpu_custom_call.1']
    %9 = vsyncpa [#allocation3], 0
    // Predicated region
    $region2: #{tpu_custom_call.1} parent=1 // pred_check
      _
    $region3: #{tpu_custom_call.1} parent=1 // pred_check_branch
      %11 = sbr.rel (0) target = $region5
    $region4: #{tpu_custom_call.1} parent=1 // pred_region
      _
    $region5: #{tpu_custom_call.1} parent=1 // pred_fallthru
      _
    // Predicated region
    $region6: #{tpu_custom_call.1} parent=1 // pred_check
      _
    $region7: #{tpu_custom_call.1} parent=1 // pred_check_branch
      %13 = sbr.rel (0) target = $region9
    $region8: #{tpu_custom_call.1} parent=1 // pred_region
      _
    $region9: #{tpu_custom_call.1} parent=1 // pred_fallthru
      _
    // Predicated region
    $region10: #{tpu_custom_call.1} parent=1 // pred_check
      _
    $region11: #{tpu_custom_call.1} parent=1 // pred_check_branch
      %15 = sbr.rel (0) target = $region13
    $region12: #{tpu_custom_call.1} parent=1 // pred_region
      _
    $region13: #{tpu_custom_call.1} parent=1 // pred_fallthru
      _
    // Predicated region
    $region14: #{tpu_custom_call.1} parent=1 // pred_check
      _
    $region15: #{tpu_custom_call.1} parent=1 // pred_check_branch
      %17 = sbr.rel (0) target = $region17
    $region16: #{tpu_custom_call.1} parent=1 // pred_region
      _
    $region17: #{tpu_custom_call.1} parent=1 // pred_fallthru
      _
    %v19 = vlaneseq
    %v20 = vand.u32 %v19, 127
    %v21 = vld [vmem:[%s0] sm:$0xff]
    %22 = vset.pattern.permute.xlu0 0
    %23 = vperm.xlu0 %22, %v21
    %v24 = vpop.permute.xlu0 %23
    %vm25 = vcmp.eq.s32.totalorder %v20, %v24
    %vm26 = vcmp.eq.s32.totalorder %v20, 100
    %vm27 = vmor %vm25, %vm26
    %v28 = vsel %vm27, 1.0, 0.0
    %v29 = vpack.c.bf16 %v28, %v28
    %v30 = vld [vmem:[%s1] sm:$0xff]
    %v31 = vld [vmem:[%s1 + $0x8] sm:$0xff]
    %v32 = vld [vmem:[%s1 + $0x10] sm:$0xff]
    %v33 = vld [vmem:[%s1 + $0x18] sm:$0xff]
    %v34 = vld [vmem:[%s1 + $0x20] sm:$0xff]
    %v35 = vld [vmem:[%s1 + $0x28] sm:$0xff]
    %v36 = vld [vmem:[%s1 + $0x30] sm:$0xff]
    %v37 = vld [vmem:[%s1 + $0x38] sm:$0xff]
    %38 = vset.pattern.permute.xlu0 0
    %39 = vperm.xlu0 %38, %v30
    %v40 = vpop.permute.xlu0 %39
    %41 = vset.pattern.permute.xlu0 0
    %42 = vperm.xlu0 %41, %v31
    %v43 = vpop.permute.xlu0 %42
    %44 = vset.pattern.permute.xlu0 0
    %45 = vperm.xlu0 %44, %v32
    %v46 = vpop.permute.xlu0 %45
    %47 = vset.pattern.permute.xlu0 0
    %48 = vperm.xlu0 %47, %v33
    %v49 = vpop.permute.xlu0 %48
    %50 = vset.pattern.permute.xlu0 0
    %51 = vperm.xlu0 %50, %v34
    %v52 = vpop.permute.xlu0 %51
    %53 = vset.pattern.permute.xlu0 0
    %54 = vperm.xlu0 %53, %v35
    %v55 = vpop.permute.xlu0 %54
    %56 = vset.pattern.permute.xlu0 0
    %57 = vperm.xlu0 %56, %v36
    %v58 = vpop.permute.xlu0 %57
    %59 = vset.pattern.permute.xlu0 0
    %60 = vperm.xlu0 %59, %v37
    %v61 = vpop.permute.xlu0 %60
    %vm62 = vcmp.eq.s32.totalorder %v20, %v40
    %vm63 = vcmp.eq.s32.totalorder %v20, %v43
    %vm64 = vcmp.eq.s32.totalorder %v20, %v46
    %vm65 = vcmp.eq.s32.totalorder %v20, %v49
    %vm66 = vcmp.eq.s32.totalorder %v20, %v52
    %vm67 = vcmp.eq.s32.totalorder %v20, %v55
    %vm68 = vcmp.eq.s32.totalorder %v20, %v58
    %vm69 = vcmp.eq.s32.totalorder %v20, %v61
    %vm70 = vcmp.eq.s32.totalorder %v20, 19
    %vm71 = vmor %vm62, %vm70
    %vm72 = vmor %vm63, %vm70
    %vm73 = vmor %vm64, %vm70
    %vm74 = vmor %vm65, %vm70
    %vm75 = vmor %vm66, %vm70
    %vm76 = vmor %vm67, %vm70
    %vm77 = vmor %vm68, %vm70
    %vm78 = vmor %vm69, %vm70
    %v79 = vsel %vm71, 1.0, 0.0
    %v80 = vsel %vm72, 1.0, 0.0
    %v81 = vsel %vm73, 1.0, 0.0
    %v82 = vsel %vm74, 1.0, 0.0
    %v83 = vsel %vm75, 1.0, 0.0
    %v84 = vsel %vm76, 1.0, 0.0
    %v85 = vsel %vm77, 1.0, 0.0
    %v86 = vsel %vm78, 1.0, 0.0
    %v87 = vpack.c.bf16 %v80, %v79
    %v88 = vpack.c.bf16 %v82, %v81
    %v89 = vpack.c.bf16 %v84, %v83
    %v90 = vpack.c.bf16 %v86, %v85
    %v91 = vld [vmem:[%s2] sm:$0xf]
    %v92 = vld [vmem:[%s2 + $0x4] sm:$0xf]
    %v93 = vld [vmem:[%s2 + $0x8] sm:$0xf]
    %v94 = vld [vmem:[%s2 + $0xc] sm:$0xf]
    %v95 = vld [vmem:[%s2 + $0x10] sm:$0xf]
    %v96 = vld [vmem:[%s2 + $0x14] sm:$0xf]
    %v97 = vld [vmem:[%s2 + $0x18] sm:$0xf]
    %v98 = vld [vmem:[%s2 + $0x1c] sm:$0xf]
    %v99 = vld [vmem:[%s2 + $0x20] sm:$0xf]
    %v100 = vld [vmem:[%s2 + $0x24] sm:$0xf]
    %v101 = vld [vmem:[%s2 + $0x28] sm:$0xf]
    %v102 = vld [vmem:[%s2 + $0x2c] sm:$0xf]
    %v103 = vld [vmem:[%s2 + $0x30] sm:$0x7]
    %v117 = vunpack.c.l.b16 %v91
    %v118 = vunpack.c.l.b16 %v92
    %v119 = vunpack.c.l.b16 %v93
    %v120 = vunpack.c.l.b16 %v94
    %v121 = vunpack.c.l.b16 %v95
    %v122 = vunpack.c.l.b16 %v96
    %v123 = vunpack.c.l.b16 %v97
    %v124 = vunpack.c.l.b16 %v98
    %v125 = vunpack.c.l.b16 %v99
    %v126 = vunpack.c.l.b16 %v100
    %v127 = vunpack.c.l.b16 %v101
    %v128 = vunpack.c.l.b16 %v102
    %v129 = vunpack.c.l.b16 %v103
    %v130 = vpack.c.b16 %v118, %v117
    %v131 = vpack.c.b16 %v120, %v119
    %v132 = vpack.c.b16 %v122, %v121
    %v133 = vpack.c.b16 %v124, %v123
    %v134 = vpack.c.b16 %v126, %v125
    %v135 = vpack.c.b16 %v128, %v127
    %v136 = vpack.c.b16 %v129, %v129
    %vm143 = vcmask 826368
    %v145 = vsel %vm143, %v29, 0
    %vm147 = vcmask 1041408
    %vm148 = vcmask 1042432
    %v149 = vsel %vm147, 4294967295, 65535
    %v150 = vsel %vm148, %v149, 0
    %v152 = vand.u32 %v136, %v150
    %154 = vmatprep.subr.bf16.mxu0 0
    %155 = vmatpush1.bf16.msra.mxu0 %v130
    %156 = vmatprep.subr.bf16.mxu0 0
    %157 = vmatpush1.bf16.msra.mxu0 %v131
    %158 = vmatprep.subr.bf16.mxu0 0
    %159 = vmatpush1.bf16.msra.mxu0 %v132
    %160 = vmatprep.subr.bf16.mxu0 0
    %161 = vmatpush1.bf16.msra.mxu0 %v133
    %162 = vmatprep.subr.bf16.mxu0 0
    %163 = vmatpush1.bf16.msra.mxu0 %v134
    %164 = vmatprep.subr.bf16.mxu0 0
    %165 = vmatpush1.bf16.msra.mxu0 %v135
    %166 = vmatprep.subr.bf16.mxu0 0
    %167 = vmatpush1.bf16.msra.mxu0 %v152
    %168 = vmatprep.subr.bf16.mxu0 0
    %169 = vmatpush1.bf16.msra.mxu0 0
    %170 = vmatprep.subr.bf16.mxu0 0
    %171 = vmatpush1.bf16.msra.mxu0 0
    %172 = vmatprep.subr.bf16.mxu0 0
    %173 = vmatpush1.bf16.msra.mxu0 0
    %174 = vmatprep.subr.bf16.mxu0 0
    %175 = vmatpush1.bf16.msra.mxu0 0
    %176 = vmatprep.subr.bf16.mxu0 0
    %177 = vmatpush1.bf16.msra.mxu0 0
    %178 = vmatprep.subr.bf16.mxu0 0
    %179 = vmatpush1.bf16.msra.mxu0 0
    %180 = vmatprep.subr.bf16.mxu0 0
    %181 = vmatpush1.bf16.msra.mxu0 0
    %182 = vmatprep.subr.bf16.mxu0 0
    %183 = vmatpush1.bf16.msra.mxu0 0
    %184 = vmatprep.subr.bf16.mxu0 0
    %185 = vmatpush1.bf16.msra.mxu0 0
    %186 = vmatprep.mubr.bf16.mxu0 0
    %187 = vmatmul.mubr.bf16.gmra.mrb[0].mxu0 %v145
    %v188 = vpop.f32.mrb[0].mxu0
    %v189 = vadd.f32 0.0, %v188
    %v190 = vpop.f32.mrb[0].mxu0
    %v191 = vpop.f32.mrb[0].mxu0
    %v192 = vpop.f32.mrb[0].mxu0
    %193 = vdwg.mxu0
    %v194 = vmax.f32 %v189, 0.0
    %v195 = vld [vmem:[%s3] sm:$0xf]
    %v196 = vld [vmem:[%s3 + $0x4] sm:$0xf]
    %v197 = vld [vmem:[%s3 + $0x8] sm:$0x3]
    %v201 = vunpack.c.l.b16 %v195
    %v202 = vunpack.c.l.b16 %v196
    %v203 = vunpack.c.l.b16 %v197
    %v204 = vpack.c.b16 %v202, %v201
    %v205 = vpack.c.b16 %v203, %v203
    %vm207 = vcmask 162816
    %v209 = vsel %vm207, %v87, 0
    %v212 = vsel %vm207, %v88, 0
    %v215 = vsel %vm207, %v89, 0
    %v218 = vsel %vm207, %v90, 0
    %v221 = vsel %vm147, %v205, 0
    %223 = vmatprep.subr.bf16.mxu0 0
    %224 = vmatpush1.bf16.msra.mxu0 %v204
    %225 = vmatprep.subr.bf16.mxu0 0
    %226 = vmatpush1.bf16.msra.mxu0 %v221
    %227 = vmatprep.subr.bf16.mxu0 0
    %228 = vmatpush1.bf16.msra.mxu0 0
    %229 = vmatprep.subr.bf16.mxu0 0
    %230 = vmatpush1.bf16.msra.mxu0 0
    %231 = vmatprep.subr.bf16.mxu0 0
    %232 = vmatpush1.bf16.msra.mxu0 0
    %233 = vmatprep.subr.bf16.mxu0 0
    %234 = vmatpush1.bf16.msra.mxu0 0
    %235 = vmatprep.subr.bf16.mxu0 0
    %236 = vmatpush1.bf16.msra.mxu0 0
    %237 = vmatprep.subr.bf16.mxu0 0
    %238 = vmatpush1.bf16.msra.mxu0 0
    %239 = vmatprep.subr.bf16.mxu0 0
    %240 = vmatpush1.bf16.msra.mxu0 0
    %241 = vmatprep.subr.bf16.mxu0 0
    %242 = vmatpush1.bf16.msra.mxu0 0
    %243 = vmatprep.subr.bf16.mxu0 0
    %244 = vmatpush1.bf16.msra.mxu0 0
    %245 = vmatprep.subr.bf16.mxu0 0
    %246 = vmatpush1.bf16.msra.mxu0 0
    %247 = vmatprep.subr.bf16.mxu0 0
    %248 = vmatpush1.bf16.msra.mxu0 0
    %249 = vmatprep.subr.bf16.mxu0 0
    %250 = vmatpush1.bf16.msra.mxu0 0
    %251 = vmatprep.subr.bf16.mxu0 0
    %252 = vmatpush1.bf16.msra.mxu0 0
    %253 = vmatprep.subr.bf16.mxu0 0
    %254 = vmatpush1.bf16.msra.mxu0 0
    %255 = vmatprep.mubr.bf16.mxu0 0
    %256 = vmatmul.mubr.bf16.gmra.mrb[0].mxu0 %v209
    %v257 = vpop.f32.mrb[0].mxu0
    %v258 = vadd.f32 0.0, %v257
    %v259 = vpop.f32.mrb[0].mxu0
    %v260 = vpop.f32.mrb[0].mxu0
    %v261 = vadd.f32 0.0, %v260
    %v262 = vpop.f32.mrb[0].mxu0
    %263 = vmatprep.mubr.bf16.mxu0 0
    %264 = vmatmul.mubr.bf16.gmra.mrb[0].mxu0 %v212
    %v265 = vpop.f32.mrb[0].mxu0
    %v266 = vadd.f32 0.0, %v265
    %v267 = vpop.f32.mrb[0].mxu0
    %v268 = vpop.f32.mrb[0].mxu0
    %v269 = vadd.f32 0.0, %v268
    %v270 = vpop.f32.mrb[0].mxu0
    %271 = vmatprep.mubr.bf16.mxu0 0
    %272 = vmatmul.mubr.bf16.gmra.mrb[0].mxu0 %v215
    %v273 = vpop.f32.mrb[0].mxu0
    %v274 = vadd.f32 0.0, %v273
    %v275 = vpop.f32.mrb[0].mxu0
    %v276 = vpop.f32.mrb[0].mxu0
    %v277 = vadd.f32 0.0, %v276
    %v278 = vpop.f32.mrb[0].mxu0
    %279 = vmatprep.mubr.bf16.mxu0 0
    %280 = vmatmul.mubr.bf16.gmra.mrb[0].mxu0 %v218
    %v281 = vpop.f32.mrb[0].mxu0
    %v282 = vadd.f32 0.0, %v281
    %v283 = vpop.f32.mrb[0].mxu0
    %v284 = vpop.f32.mrb[0].mxu0
    %v285 = vadd.f32 0.0, %v284
    %v286 = vpop.f32.mrb[0].mxu0
    %287 = vdwg.mxu0
    %v288 = vmax.f32 %v258, 0.0
    %v289 = vmax.f32 %v261, 0.0
    %v290 = vmax.f32 %v266, 0.0
    %v291 = vmax.f32 %v269, 0.0
    %v292 = vmax.f32 %v274, 0.0
    %v293 = vmax.f32 %v277, 0.0
    %v294 = vmax.f32 %v282, 0.0
    %v295 = vmax.f32 %v285, 0.0
    %vm296 = vcmask 261120
    %v297 = vsel %vm296, %v288, 0.0
    %v298 = vsel %vm296, %v289, 0.0
    %v299 = vadd.f32 %v297, %v298
    %v300 = vsel %vm296, %v290, 0.0
    %v301 = vadd.f32 %v299, %v300
    %v302 = vsel %vm296, %v291, 0.0
    %v303 = vadd.f32 %v301, %v302
    %v304 = vsel %vm296, %v292, 0.0
    %v305 = vadd.f32 %v303, %v304
    %v306 = vsel %vm296, %v293, 0.0
    %v307 = vadd.f32 %v305, %v306
    %v308 = vsel %vm296, %v294, 0.0
    %v309 = vadd.f32 %v307, %v308
    %v310 = vsel %vm296, %v295, 0.0
    %v311 = vadd.f32 %v309, %v310
    %v312 = vmul.f32 %v311, 0.125
    %313 = vst.msk [vmem:[#allocation2] sm:$0xff] %vm296, %v194
    %315 = vrot.lane.b32.xlu0 %v312, 32
    %v316 = vpop.permute.xlu0 %315
    %vm318 = vcmask 523520
    %319 = vst.msk [vmem:[#allocation2] sm:$0xff] %vm318, %v316
    // Predicated region
    $region18: #{tpu_custom_call.1} parent=1 // pred_check
      _
    $region19: #{tpu_custom_call.1} parent=1 // pred_check_branch
      %321 = sbr.rel (0) target = $region21
    $region20: #{tpu_custom_call.1} parent=1 // pred_region
      %s323 = ssub.s32 128, 128
      %324 = vsyncadd [#allocation3], %s323
      %s326 = sshll.u32 [#allocation2], 4
      %s327 = int_to_ptr.vmem [resolvable:$true] %s326
      %329 = dma.vmem_to_hbm [thread:$0]  %s327, 128, %s4, [#allocation3]
    $region21: #{tpu_custom_call.1} parent=1 // pred_fallthru
      _
    // Predicated region
    $region22: #{tpu_custom_call.1} parent=1 // pred_check
      _
    $region23: #{tpu_custom_call.1} parent=1 // pred_check_branch
      %331 = sbr.rel (0) target = $region25
    $region24: #{tpu_custom_call.1} parent=1 // pred_region
      %332 = dma.done [#allocation3], 128
    $region25: #{tpu_custom_call.1} parent=1 // pred_fallthru
      _
    %333 = vsyncpa [#allocation3], 1

</llo_original>
